<compile_context>
chip_gen: v7x
topology: tpu7x:2x2x1
jax: 0.10.0
libtpu: 0.0.40
codegen_flags: <defaults>
</compile_context>

<pallas_src>
import functools

import jax
import jax.numpy as jnp
from jax import lax
from jax.experimental import pallas as pl
from jax.experimental.pallas import tpu as pltpu


def _seq_xent_nll_kernel(labels_ref, logits_ref, nll_ref, *, label_smoothing):
    """Per-token negative log-likelihood for one token tile.

    labels_ref: (T, 1) int32 in VMEM
    logits_ref: (T, V) native dtype in VMEM
    nll_ref:    (T, 1) f32 in VMEM
    """
    x = logits_ref[...].astype(jnp.float32)                    # (T, V)
    labels = labels_ref[...]                                    # (T, 1)
    T, V = x.shape

    # Numerically stable logsumexp along the vocab (lane) axis.
    x_max = jnp.max(x, axis=-1, keepdims=True)                  # (T, 1)
    shifted = x - x_max                                         # (T, V)
    lse = jnp.log(jnp.sum(jnp.exp(shifted), axis=-1, keepdims=True))  # (T, 1)

    # One-hot via iota comparison (TPU-friendly "gather").
    vocab_iota = lax.broadcasted_iota(jnp.int32, (T, V), 1)
    is_label = vocab_iota == labels                             # (T, V)

    if label_smoothing > 0.0:
        sv = label_smoothing / float(V)
        # Smoothed target distribution sums to 1, so
        #   nll = -sum(w * log_probs) = lse - sum(w * shifted)
        w = jnp.where(is_label, 1.0 - label_smoothing + sv, sv)
        tgt = jnp.sum(w * shifted, axis=-1, keepdims=True)      # (T, 1)
    else:
        tgt = jnp.sum(jnp.where(is_label, shifted, 0.0), axis=-1,
                      keepdims=True)                            # (T, 1)

    nll_ref[...] = lse - tgt


def _choose_token_tile(n_tokens, vocab, in_itemsize):
    """Pick a token-tile size that fits a conservative VMEM budget.

    Budget model: double-buffered native-dtype input tile plus ~3 f32-sized
    (T, V) temporaries (upcast / shifted / exp-or-onehot), kept well under the
    scoped VMEM limits of v5e / v6e / v7x.
    """
    per_token_bytes = vocab * (2 * in_itemsize + 12)
    budget_bytes = 20 * 1024 * 1024
    tile = budget_bytes // max(per_token_bytes, 1)
    tile = int(max(8, min(512, tile)))
    tile -= tile % 8
    tile = max(tile, 8)
    # Never larger than the (8-rounded) token count.
    tile = min(tile, max(8, ((n_tokens + 7) // 8) * 8))
    # Prefer a tile that divides the token count (avoids a padding copy), but
    # only if it is not drastically smaller than the budget-derived tile.
    t = tile
    while t > 8 and n_tokens % t != 0:
        t -= 8
    if n_tokens % t == 0 and t * 4 >= tile:
        return t
    return tile


def sequence_cross_entropy_loss(logits, labels, *, ignore_index=None,
                                label_smoothing=-1.0, token_tile=None):
    """Pallas-backed equivalent of SequenceCrossEntropyLoss.forward."""
    if label_smoothing > 1.0:
        raise ValueError(
            'The param label_smoothing should be in the range of 0.0 to 1.0.')

    B, S, V = logits.shape
    N = B * S

    # Keep logits in their native dtype across the DMA (no wrapper upcast).
    logits_flat = logits.reshape(N, V)
    labels_flat = labels.reshape(N).astype(jnp.int32)

    if token_tile is None:
        token_tile = _choose_token_tile(N, V, logits.dtype.itemsize)
    else:
        token_tile = int(token_tile)
        token_tile = max(8, token_tile - token_tile % 8)
        token_tile = min(token_tile, max(8, ((N + 7) // 8) * 8))

    pad = (-N) % token_tile
    if pad:
        # Fallback path for awkward token counts; padded rows are sliced off.
        logits_flat = jnp.pad(logits_flat, ((0, pad), (0, 0)))
        labels_flat = jnp.pad(labels_flat, ((0, pad),))
    n_pad = N + pad
    num_tiles = n_pad // token_tile

    labels_col = labels_flat.reshape(n_pad, 1)

    kernel = functools.partial(_seq_xent_nll_kernel,
                               label_smoothing=float(label_smoothing))

    nll_col = pl.pallas_call(
        kernel,
        out_shape=jax.ShapeDtypeStruct((n_pad, 1), jnp.float32),
        grid=(num_tiles,),
        in_specs=[
            pl.BlockSpec((token_tile, 1), lambda i: (i, 0)),   # labels
            pl.BlockSpec((token_tile, V), lambda i: (i, 0)),   # logits (native)
        ],
        out_specs=pl.BlockSpec((token_tile, 1), lambda i: (i, 0)),
        compiler_params=pltpu.CompilerParams(
            dimension_semantics=("parallel",),
            vmem_limit_bytes=48 * 1024 * 1024,
        ),
    )(labels_col, logits_flat)

    # Tiny (B, S) finish in plain JAX: mask, per-sequence mean, batch mean.
    nll = nll_col[:N, 0].reshape(B, S)
    if ignore_index is None:
        mask = jnp.ones((B, S), jnp.float32)
    else:
        mask = (labels != ignore_index).astype(jnp.float32)

    per_seq = jnp.sum(nll * mask, axis=1) / (jnp.sum(mask, axis=1) + 1e-13)
    return jnp.mean(per_seq)


def _reference_loss(logits, labels, ignore_index=None, label_smoothing=-1.0):
    """Pure-JAX reference mirroring the PyTorch module exactly."""
    logits = logits.astype(jnp.float32)
    B, S, V = logits.shape
    if ignore_index is None:
        mask = jnp.ones((B, S), jnp.float32)
    else:
        mask = (labels != ignore_index).astype(jnp.float32)
    log_probs = jax.nn.log_softmax(logits, axis=-1)
    if label_smoothing > 0.0:
        sv = label_smoothing / float(V)
        one_hot = jax.nn.one_hot(labels, V) * (1.0 - label_smoothing) + sv
        nll = -jnp.sum(log_probs * one_hot, axis=-1)
    else:
        nll = -jnp.take_along_axis(log_probs, labels[..., None], axis=-1)[..., 0]
    loss = jnp.sum(nll * mask, axis=1) / (jnp.sum(mask, axis=1) + 1e-13)
    return jnp.mean(loss)


if __name__ == "__main__":
    key = jax.random.PRNGKey(0)
    k1, k2, k3, k4 = jax.random.split(key, 4)

    # Case 1/2: small f32 problem (single tile), gather and smoothing branches.
    B, S, V = 2, 8, 128
    logits = jax.random.normal(k1, (B, S, V), dtype=jnp.float32)
    labels = jax.random.randint(k2, (B, S), 0, V, dtype=jnp.int32)
    labels = labels.at[:, -2:].set(0)      # exercise ignore_index masking

    loss1 = sequence_cross_entropy_loss(logits, labels, ignore_index=0,
                                        label_smoothing=-1.0)
    ref1 = _reference_loss(logits, labels, ignore_index=0, label_smoothing=-1.0)

    loss2 = sequence_cross_entropy_loss(logits, labels, ignore_index=None,
                                        label_smoothing=0.1)
    ref2 = _reference_loss(logits, labels, ignore_index=None,
                           label_smoothing=0.1)

    # Case 3: bf16 logits, multi-tile grid (forced small tile), mask + smoothing.
    B2, S2, V2 = 2, 64, 256
    logits_b = jax.random.normal(k3, (B2, S2, V2),
                                 dtype=jnp.float32).astype(jnp.bfloat16)
    labels_b = jax.random.randint(k4, (B2, S2), 0, V2, dtype=jnp.int32)
    labels_b = labels_b.at[:, :4].set(0)
    loss3 = sequence_cross_entropy_loss(logits_b, labels_b, ignore_index=0,
                                        label_smoothing=0.1, token_tile=32)
    ref3 = _reference_loss(logits_b, labels_b, ignore_index=0,
                           label_smoothing=0.1)

    # Case 4: token count not divisible by 8 -> exercises the padding path.
    B3, S3, V3 = 3, 5, 128
    logits_c = jax.random.normal(k1, (B3, S3, V3), dtype=jnp.float32)
    labels_c = jax.random.randint(k2, (B3, S3), 0, V3, dtype=jnp.int32)
    loss4 = sequence_cross_entropy_loss(logits_c, labels_c, ignore_index=None,
                                        label_smoothing=-1.0)
    ref4 = _reference_loss(logits_c, labels_c, ignore_index=None,
                           label_smoothing=-1.0)

    jax.block_until_ready((loss1, loss2, loss3, loss4))

    assert jnp.allclose(loss1, ref1, atol=1e-5, rtol=1e-5), (loss1, ref1)
    assert jnp.allclose(loss2, ref2, atol=1e-5, rtol=1e-5), (loss2, ref2)
    assert jnp.allclose(loss3, ref3, atol=1e-4, rtol=1e-4), (loss3, ref3)
    assert jnp.allclose(loss4, ref4, atol=1e-5, rtol=1e-5), (loss4, ref4)
    print("KERNEL_OK")
</pallas_src>

<mosaic_0001>
module attributes {stable_mosaic.version = 11 : i64} {
  func.func @_seq_xent_nll_kernel(%arg0: i32, %arg1: memref<16x1xi32, #tpu.memory_space<vmem>>, %arg2: memref<16x128xf32, #tpu.memory_space<vmem>>, %arg3: memref<16x1xf32, #tpu.memory_space<vmem>>) attributes {dimension_semantics = [#tpu.dimension_semantics<parallel>], iteration_bounds = array<i64: 1>, scalar_prefetch = 0 : i64, scratch_operands = 0 : i64, tpu.core_type = #tpu.core_type<tc>, window_params = [{transform_indices = @transform_0, window_bounds = array<i64: 16, 1>}, {transform_indices = @transform_1, window_bounds = array<i64: 16, 128>}, {transform_indices = @transform_2, window_bounds = array<i64: 16, 1>}]} {
    %c0 = arith.constant 0 : index
    %c0_0 = arith.constant 0 : index
    %0 = vector.load %arg2[%c0, %c0_0] : memref<16x128xf32, #tpu.memory_space<vmem>>, vector<16x128xf32>
    %c0_1 = arith.constant 0 : index
    %c0_2 = arith.constant 0 : index
    %1 = vector.load %arg1[%c0_1, %c0_2] : memref<16x1xi32, #tpu.memory_space<vmem>>, vector<16x1xi32>
    %cst = arith.constant dense<0xFF800000> : vector<16xf32>
    %2 = vector.multi_reduction <maximumf>, %0, %cst [1] : vector<16x128xf32> to vector<16xf32>
    %3 = vector.shape_cast %2 : vector<16xf32> to vector<16x1xf32>
    %4 = vector.broadcast %3 : vector<16x1xf32> to vector<16x128xf32>
    %5 = arith.subf %0, %4 : vector<16x128xf32>
    %6 = math.exp %5 : vector<16x128xf32>
    %cst_3 = arith.constant dense<0.000000e+00> : vector<16xf32>
    %7 = vector.multi_reduction <add>, %6, %cst_3 [1] : vector<16x128xf32> to vector<16xf32>
    %8 = vector.shape_cast %7 : vector<16xf32> to vector<16x1xf32>
    %9 = math.log %8 : vector<16x1xf32>
    %10 = tpu.iota {dimensions = array<i32: 1>} : vector<16x128xi32>
    %11 = vector.broadcast %1 : vector<16x1xi32> to vector<16x128xi32>
    %12 = arith.cmpi eq, %10, %11 : vector<16x128xi32>
    %cst_4 = arith.constant 0.000000e+00 : f32
    %13 = vector.broadcast %cst_4 : f32 to vector<16x128xf32>
    %14 = arith.select %12, %5, %13 : vector<16x128xi1>, vector<16x128xf32>
    %cst_5 = arith.constant dense<0.000000e+00> : vector<16xf32>
    %15 = vector.multi_reduction <add>, %14, %cst_5 [1] : vector<16x128xf32> to vector<16xf32>
    %16 = vector.shape_cast %15 : vector<16xf32> to vector<16x1xf32>
    %17 = arith.subf %9, %16 : vector<16x1xf32>
    %c0_6 = arith.constant 0 : index
    %c0_7 = arith.constant 0 : index
    %18 = vector.load %arg3[%c0_6, %c0_7] : memref<16x1xf32, #tpu.memory_space<vmem>>, vector<16x1xf32>
    tpu.vector_store %arg3[%c0_6, %c0_7], %17 {strides = array<i32>} : memref<16x1xf32, #tpu.memory_space<vmem>>, vector<16x1xf32>,
    return
  }
  func.func @transform_0(%arg0: i32) -> (i32, i32) {
    %c0_i32 = arith.constant 0 : i32
    %c0_i32_0 = arith.constant 0 : i32
    return %arg0, %c0_i32 : i32, i32
  }
  func.func @transform_1(%arg0: i32) -> (i32, i32) {
    %c0_i32 = arith.constant 0 : i32
    %c0_i32_0 = arith.constant 0 : i32
    return %arg0, %c0_i32 : i32, i32
  }
  func.func @transform_2(%arg0: i32) -> (i32, i32) {
    %c0_i32 = arith.constant 0 : i32
    %c0_i32_0 = arith.constant 0 : i32
    return %arg0, %c0_i32 : i32, i32
  }
}

</mosaic_0001>

<llo_original>
// kernel: tpu_custom_call.1
$region0: #{tpu_custom_call.1}
  #allocation0 [shape = 'u32[]', space=smem, size = 0x4, offset = 0x4, fixed_abs, tag = 'smem constant byte address 0x4 - core index']
  #allocation1 [shape = 'u32[144,128]{1,0:T(1,128)}', space=vmem, size = 0x12000, scoped, tag = 'internal scratch']
  %s0 = inlined_call_operand.vmem [shape: s32[16,1], index: 0, kind: input, shape index: {}]
  %s1 = inlined_call_operand.vmem [shape: f32[16,128], index: 1, kind: input, shape index: {}]
  %s2 = inlined_call_operand.vmem [shape: f32[16,1], index: 2, kind: output, shape index: {}]
  %s3 = sld [smem:[#allocation0]]
  $region18: #{tpu_custom_call.1} parent=0
    _
  %s5 = ssub.s32 1, %s3
  %s6 = scalar_select 0, %s5, %s3
  // Predicated region
  $region2: #{tpu_custom_call.1} parent=0 // pred_check
    _
  $region3: #{tpu_custom_call.1} parent=0 // pred_check_branch
    %8 = sbr.rel (0) target = $region5
  $region4: #{tpu_custom_call.1} parent=0 // pred_region
    _
  $region5: #{tpu_custom_call.1} parent=0 // pred_fallthru
    _
  // Predicated region
  $region6: #{tpu_custom_call.1} parent=0 // pred_check
    _
  $region7: #{tpu_custom_call.1} parent=0 // pred_check_branch
    %10 = sbr.rel (0) target = $region9
  $region8: #{tpu_custom_call.1} parent=0 // pred_region
    _
  $region9: #{tpu_custom_call.1} parent=0 // pred_fallthru
    _
  %v11 = vld [vmem:[%s1] sm:$0xff]
  %v12 = vld [vmem:[%s1 + $0x8] sm:$0xff]
  %v13 = vld [vmem:[%s0] sm:$0xff]
  %v14 = vld [vmem:[%s0 + $0x8] sm:$0xff]
  %15 = vmax.xlane.f32.xlu0 %v11
  %v16 = vpop.xlane.xlu0 %15
  %17 = vmax.xlane.f32.xlu0 %v12
  %v18 = vpop.xlane.xlu0 %17
  %v19 = vsub.f32 %v11, %v16
  %v20 = vsub.f32 %v12, %v18
  %v21 = vmul.f32 %v19, 1.442695
  %v22 = vpow.pop %v21
  %v23 = vmul.f32 %v20, 1.442695
  %v24 = vpow.pop %v23
  %25 = vadd.xlane.f32.xlu0 %v22
  %v26 = vpop.xlane.xlu0 %25
  %27 = vadd.xlane.f32.xlu0 %v24
  %v28 = vpop.xlane.xlu0 %27
  %v29 = vlog2.pop %v26
  %v30 = vmul.f32 %v29, 0.6931472
  %v31 = vlog2.pop %v28
  %v32 = vmul.f32 %v31, 0.6931472
  %v33 = vlaneseq
  %v34 = vand.u32 %v33, 127
  %35 = vset.pattern.permute.xlu0 0
  %36 = vperm.xlu0 %35, %v13
  %v37 = vpop.permute.xlu0 %36
  %38 = vset.pattern.permute.xlu0 0
  %39 = vperm.xlu0 %38, %v14
  %v40 = vpop.permute.xlu0 %39
  %vm41 = vcmp.eq.s32.totalorder %v34, %v37
  %vm42 = vcmp.eq.s32.totalorder %v34, %v40
  %v43 = vsel %vm41, %v19, 0.0
  %v44 = vsel %vm42, %v20, 0.0
  %45 = vadd.xlane.f32.xlu0 %v43
  %v46 = vpop.xlane.xlu0 %45
  %47 = vadd.xlane.f32.xlu0 %v44
  %v48 = vpop.xlane.xlu0 %47
  %v49 = vsub.f32 %v30, %v46
  %v50 = vsub.f32 %v32, %v48
  %vm51 = vcmask 7168
  %52 = vst.msk [vmem:[%s2] sm:$0xff] %vm51, %v49
  %53 = vst.msk [vmem:[%s2 + $0x8] sm:$0xff] %vm51, %v50
  // Predicated region
  $region10: #{tpu_custom_call.1} parent=0 // pred_check
    _
  $region11: #{tpu_custom_call.1} parent=0 // pred_check_branch
    %55 = sbr.rel (0) target = $region13
  $region12: #{tpu_custom_call.1} parent=0 // pred_region
    _
  $region13: #{tpu_custom_call.1} parent=0 // pred_fallthru
    _
  // Predicated region
  $region14: #{tpu_custom_call.1} parent=0 // pred_check
    _
  $region15: #{tpu_custom_call.1} parent=0 // pred_check_branch
    %57 = sbr.rel (0) target = $region17
  $region16: #{tpu_custom_call.1} parent=0 // pred_region
    _
  $region17: #{tpu_custom_call.1} parent=0 // pred_fallthru
    _

</llo_original>
